<compile_context>
chip_gen: v6e
topology: v6e:2x2x1
jax: 0.10.0
libtpu: 0.0.40
codegen_flags: <defaults>
</compile_context>

<pallas_src>
import functools
import math

import jax
import jax.numpy as jnp
from jax.experimental import pallas as pl
from jax.experimental.pallas import tpu as pltpu


def _conv1x1_kernel(x_ref, w_ref, o_ref, *, nb):
    # x_ref: (nb, Cin, ts), w_ref: (Cout, Cin), o_ref: (nb, Cout, ts)
    w = w_ref[...]  # hoisted: resident weight, loaded once per grid step
    for b in range(nb):  # static unroll: nb clean 2D MXU matmuls per step
        o_ref[b] = jnp.dot(
            w, x_ref[b], preferred_element_type=jnp.float32
        ).astype(o_ref.dtype)


def _choose_blocks(N, Cin, Cout, S, itemsize, tile_s, max_nb, target_in_bytes):
    # Spatial tile: full extent if it fits, otherwise a multiple of 128 lanes
    # (unmasked lane-dense stores); the ragged tail is OOB-masked by Pallas.
    if S <= tile_s:
        ts = S
    else:
        ts = max(128, (tile_s // 128) * 128)

    # Batch images per grid step: target ~target_in_bytes of activation per
    # step so per-step (~0.35us) overhead is amortized, capped by the unroll
    # budget and the double-buffered VMEM footprint.
    nb = max(1, int(target_in_bytes) // max(1, Cin * ts * itemsize))
    nb = int(min(nb, max_nb, N))
    while nb > 1 and 2 * nb * (Cin + Cout) * ts * itemsize > 24 * 1024 * 1024:
        nb -= 1

    # v7x megacore: prefer an even number of batch steps (>1) so both
    # TensorCores get balanced halves of the "parallel" grid (no-op on 1-TC
    # v5e/v6e).
    steps = -(-N // nb)
    if steps > 1 and steps % 2 == 1:
        nb = -(-N // (steps + 1))
    return nb, ts


def downsample_c(x_nchw, weight, stride, *, tile_s=2048, max_nb=32):
    """1x1 conv, stride=`stride`, padding=0, bias=False (DownsampleC.forward).

    x_nchw: (N, Cin, H, W)
    weight: (Cout, Cin) or PyTorch-shaped (Cout, Cin, 1, 1)
    returns: (N, Cout, Ho, Wo) with Ho = floor((H-1)/stride)+1 (same for Wo)
    """
    N, Cin, H, W = x_nchw.shape
    if weight.ndim == 4:
        weight = weight.reshape(weight.shape[0], weight.shape[1])
    Cout = weight.shape[0]

    # Strided spatial subsample (what a 1x1 conv with stride>1 computes).
    # TODO(synk): move this into the kernel read path (see header comment).
    x_sub = x_nchw[:, :, ::stride, ::stride]            # (N, Cin, Ho, Wo)
    Ho, Wo = x_sub.shape[2], x_sub.shape[3]
    S = Ho * Wo

    # Lane-dense layout: channels on sublanes, spatial on lanes; no transpose.
    x_flat = x_sub.reshape(N, Cin, S)

    itemsize = jnp.dtype(x_nchw.dtype).itemsize
    nb, ts = _choose_blocks(
        N, Cin, Cout, S, itemsize, tile_s, max_nb,
        target_in_bytes=1536 * 1024,
    )
    grid = (pl.cdiv(N, nb), pl.cdiv(S, ts))  # ragged tails OOB-masked

    kernel = functools.partial(_conv1x1_kernel, nb=nb)

    out_flat = pl.pallas_call(
        kernel,
        out_shape=jax.ShapeDtypeStruct((N, Cout, S), x_nchw.dtype),
        grid=grid,
        in_specs=[
            # activation block: (nb, Cin, ts)
            pl.BlockSpec((nb, Cin, ts), lambda n, s: (n, 0, s)),
            # weight: resident in VMEM across the whole grid
            pl.BlockSpec((Cout, Cin), lambda n, s: (0, 0)),
        ],
        out_specs=pl.BlockSpec((nb, Cout, ts), lambda n, s: (n, 0, s)),
        compiler_params=pltpu.CompilerParams(
            dimension_semantics=("parallel", "parallel"),
            vmem_limit_bytes=48 * 1024 * 1024,
        ),
        cost_estimate=pl.CostEstimate(
            flops=2 * N * Cout * Cin * S,
            transcendentals=0,
            bytes_accessed=itemsize * (N * Cin * S + N * Cout * S)
            + int(weight.dtype.itemsize) * Cout * Cin,
        ),
    )(x_flat, weight)

    return out_flat.reshape(N, Cout, Ho, Wo)            # already NCHW


def _reference(x_nchw, weight, stride):
    if weight.ndim == 4:
        weight = weight.reshape(weight.shape[0], weight.shape[1])
    x_sub = x_nchw[:, :, ::stride, ::stride]
    return jnp.einsum("nchw,oc->nohw", x_sub, weight)


if __name__ == "__main__":
    key = jax.random.PRNGKey(0)
    kx, kw, kx2, kx3 = jax.random.split(key, 4)

    # DownsampleC(nIn=4, nOut=8, stride=2) at a small CIFAR-ish shape.
    N, Cin, H, W = 2, 4, 16, 16
    Cout, stride = 8, 2

    x = jax.random.normal(kx, (N, Cin, H, W), dtype=jnp.float32)
    # Conv2d(kernel_size=1, bias=False) weight (Cout, Cin, 1, 1);
    # kaiming-uniform-like bound = 1/sqrt(fan_in), fan_in = Cin * 1 * 1.
    bound = 1.0 / math.sqrt(Cin)
    weight = jax.random.uniform(
        kw, (Cout, Cin, 1, 1), dtype=jnp.float32, minval=-bound, maxval=bound
    )

    y = downsample_c(x, weight, stride)
    jax.block_until_ready(y)
    y_ref = _reference(x, weight, stride)
    assert y.shape == (N, Cout, H // stride, W // stride), y.shape
    assert jnp.allclose(y, y_ref, atol=1e-5, rtol=1e-5)

    # Exercise the ragged cdiv paths + OOB masking: N=3 with nb=2 -> 2 batch
    # steps (last ragged); S=576 with ts=256 -> 3 spatial steps (last ragged).
    N2, H2, W2 = 3, 48, 48
    x2 = jax.random.normal(kx2, (N2, Cin, H2, W2), dtype=jnp.float32)
    y2 = downsample_c(x2, weight, stride, tile_s=256, max_nb=2)
    jax.block_until_ready(y2)
    y2_ref = _reference(x2, weight, stride)
    assert y2.shape == (N2, Cout, H2 // stride, W2 // stride), y2.shape
    assert jnp.allclose(y2, y2_ref, atol=1e-5, rtol=1e-5)

    # Odd spatial extent (H=W=15, stride=2 -> Ho=Wo=8).
    x3 = jax.random.normal(kx3, (N, Cin, 15, 15), dtype=jnp.float32)
    y3 = downsample_c(x3, weight, stride)
    jax.block_until_ready(y3)
    assert jnp.allclose(y3, _reference(x3, weight, stride), atol=1e-5, rtol=1e-5)

    print("KERNEL_OK")
</pallas_src>

<mosaic_0001>
module attributes {stable_mosaic.version = 11 : i64} {
  func.func @_conv1x1_kernel(%arg0: i32, %arg1: i32, %arg2: memref<2x4x64xf32, #tpu.memory_space<vmem>>, %arg3: memref<8x4xf32, #tpu.memory_space<vmem>>, %arg4: memref<2x8x64xf32, #tpu.memory_space<vmem>>) attributes {dimension_semantics = [#tpu.dimension_semantics<parallel>, #tpu.dimension_semantics<parallel>], iteration_bounds = array<i64: 1, 1>, scalar_prefetch = 0 : i64, scratch_operands = 0 : i64, tpu.core_type = #tpu.core_type<tc>, window_params = [{transform_indices = @transform_0, window_bounds = array<i64: 2, 4, 64>}, {pipeline_mode = #tpu.pipeline_mode<synchronous>, transform_indices = @transform_1, window_bounds = array<i64: 8, 4>}, {transform_indices = @transform_2, window_bounds = array<i64: 2, 8, 64>}]} {
    %c0 = arith.constant 0 : index
    %c0_0 = arith.constant 0 : index
    %0 = vector.load %arg3[%c0, %c0_0] : memref<8x4xf32, #tpu.memory_space<vmem>>, vector<8x4xf32>
    %c0_1 = arith.constant 0 : index
    %c0_2 = arith.constant 0 : index
    %c0_3 = arith.constant 0 : index
    %1 = vector.load %arg2[%c0_1, %c0_2, %c0_3] : memref<2x4x64xf32, #tpu.memory_space<vmem>>, vector<1x4x64xf32>
    %2 = vector.shape_cast %1 : vector<1x4x64xf32> to vector<4x64xf32>
    %cst = arith.constant dense<0.000000e+00> : vector<8x64xf32>
    %3 = tpu.matmul %0, %2, %cst {dimension_numbers = #tpu.dot_dimension_numbers<[1], [0], [0], [1], [0, 0, 1, 1], [], []>} : vector<8x4xf32>, vector<4x64xf32>, vector<8x64xf32> -> vector<8x64xf32>
    %c0_4 = arith.constant 0 : index
    %c0_5 = arith.constant 0 : index
    %c0_6 = arith.constant 0 : index
    %4 = vector.load %arg4[%c0_4, %c0_5, %c0_6] : memref<2x8x64xf32, #tpu.memory_space<vmem>>, vector<1x8x64xf32>
    %5 = vector.shape_cast %4 : vector<1x8x64xf32> to vector<8x64xf32>
    %6 = vector.shape_cast %3 : vector<8x64xf32> to vector<1x8x64xf32>
    tpu.vector_store %arg4[%c0_4, %c0_5, %c0_6], %6 {strides = array<i32>} : memref<2x8x64xf32, #tpu.memory_space<vmem>>, vector<1x8x64xf32>,
    %c1 = arith.constant 1 : index
    %c0_7 = arith.constant 0 : index
    %c0_8 = arith.constant 0 : index
    %7 = vector.load %arg2[%c1, %c0_7, %c0_8] : memref<2x4x64xf32, #tpu.memory_space<vmem>>, vector<1x4x64xf32>
    %8 = vector.shape_cast %7 : vector<1x4x64xf32> to vector<4x64xf32>
    %cst_9 = arith.constant dense<0.000000e+00> : vector<8x64xf32>
    %9 = tpu.matmul %0, %8, %cst_9 {dimension_numbers = #tpu.dot_dimension_numbers<[1], [0], [0], [1], [0, 0, 1, 1], [], []>} : vector<8x4xf32>, vector<4x64xf32>, vector<8x64xf32> -> vector<8x64xf32>
    %c1_10 = arith.constant 1 : index
    %c0_11 = arith.constant 0 : index
    %c0_12 = arith.constant 0 : index
    %10 = vector.load %arg4[%c1_10, %c0_11, %c0_12] : memref<2x8x64xf32, #tpu.memory_space<vmem>>, vector<1x8x64xf32>
    %11 = vector.shape_cast %10 : vector<1x8x64xf32> to vector<8x64xf32>
    %12 = vector.shape_cast %9 : vector<8x64xf32> to vector<1x8x64xf32>
    tpu.vector_store %arg4[%c1_10, %c0_11, %c0_12], %12 {strides = array<i32>} : memref<2x8x64xf32, #tpu.memory_space<vmem>>, vector<1x8x64xf32>,
    return
  }
  func.func @transform_0(%arg0: i32, %arg1: i32) -> (i32, i32, i32) {
    %c0_i32 = arith.constant 0 : i32
    %c0_i32_0 = arith.constant 0 : i32
    return %arg0, %c0_i32, %arg1 : i32, i32, i32
  }
  func.func @transform_1(%arg0: i32, %arg1: i32) -> (i32, i32) {
    %c0_i32 = arith.constant 0 : i32
    %c0_i32_0 = arith.constant 0 : i32
    %c0_i32_1 = arith.constant 0 : i32
    return %c0_i32, %c0_i32_0 : i32, i32
  }
  func.func @transform_2(%arg0: i32, %arg1: i32) -> (i32, i32, i32) {
    %c0_i32 = arith.constant 0 : i32
    %c0_i32_0 = arith.constant 0 : i32
    return %arg0, %c0_i32, %arg1 : i32, i32, i32
  }
}

</mosaic_0001>

<llo_original>
// kernel: tpu_custom_call.1
$region0: #{tpu_custom_call.1}
  #allocation0 [shape = 'u32[]', space=smem, size = 0x4, offset = 0x4, fixed_abs, tag = 'smem constant byte address 0x4 - core index']
  #allocation1 [shape = 'u32[144,128]{1,0:T(1,128)}', space=vmem, size = 0x12000, scoped, tag = 'internal scratch']
  %s0 = inlined_call_operand.vmem [shape: f32[2,4,64], index: 0, kind: input, shape index: {}]
  %s1 = inlined_call_operand.vmem [shape: f32[8,4], index: 1, kind: input, shape index: {}]
  %s2 = inlined_call_operand.hbm [shape: f32[2,8,64], index: 2, kind: output, shape index: {}]
  %s3 = sld [smem:[#allocation0]]
  $region18: #{tpu_custom_call.1} parent=0
    _
  %s5 = ssub.s32 1, %s3
  %s6 = scalar_select 0, %s5, %s3
  $region1: #{tpu_custom_call.1} parent=0
    #allocation2 [shape = 'u8[8192]{0}', space=vmem, size = 0x2000, scoped, tag = 'output window, operand 0, single buffered']
    #allocation3 [shape = 's32[1]{0}', space=sflag, size = 0x4, scoped, tag = 'scoped memory for tpu_custom_call.1']
    %7 = vsyncpa [#allocation3], 0
    // Predicated region
    $region2: #{tpu_custom_call.1} parent=1 // pred_check
      _
    $region3: #{tpu_custom_call.1} parent=1 // pred_check_branch
      %9 = sbr.rel (0) target = $region5
    $region4: #{tpu_custom_call.1} parent=1 // pred_region
      _
    $region5: #{tpu_custom_call.1} parent=1 // pred_fallthru
      _
    // Predicated region
    $region6: #{tpu_custom_call.1} parent=1 // pred_check
      _
    $region7: #{tpu_custom_call.1} parent=1 // pred_check_branch
      %11 = sbr.rel (0) target = $region9
    $region8: #{tpu_custom_call.1} parent=1 // pred_region
      _
    $region9: #{tpu_custom_call.1} parent=1 // pred_fallthru
      _
    %v12 = vld [vmem:[%s1] sm:$0xff]
    %v13 = vld [vmem:[%s0] sm:$0xf]
    %vm14 = vcmask 31744
    %v16 = vsel %vm14, %v12, 0
    %vm18 = vcmask 1043456
    %v20 = vsel %vm18, %v13, 0
    %22 = vmatprep.subr.mxu0 0.0
    %23 = vmatpush1.msra.mxu0 0.0
    %24 = vmatprep.subr.mxu0 0.0
    %25 = vmatpush1.msra.mxu0 0.0
    %26 = vmatprep.subr.mxu0 0.0
    %27 = vmatpush1.msra.mxu0 0.0
    %28 = vmatprep.subr.mxu0 0.0
    %29 = vmatpush1.msra.mxu0 0.0
    %30 = vmatprep.subr.mxu0 0.0
    %31 = vmatpush1.msra.mxu0 0.0
    %32 = vmatprep.subr.mxu0 0.0
    %33 = vmatpush1.msra.mxu0 0.0
    %34 = vmatprep.subr.mxu0 0.0
    %35 = vmatpush1.msra.mxu0 0.0
    %36 = vmatprep.subr.mxu0 0.0
    %37 = vmatpush1.msra.mxu0 0.0
    %38 = vmatprep.subr.mxu0 0.0
    %39 = vmatpush1.msra.mxu0 0.0
    %40 = vmatprep.subr.mxu0 0.0
    %41 = vmatpush1.msra.mxu0 0.0
    %42 = vmatprep.subr.mxu0 0.0
    %43 = vmatpush1.msra.mxu0 0.0
    %44 = vmatprep.subr.mxu0 0.0
    %45 = vmatpush1.msra.mxu0 0.0
    %46 = vmatprep.subr.mxu0 0.0
    %47 = vmatpush1.msra.mxu0 0.0
    %48 = vmatprep.subr.mxu0 0.0
    %49 = vmatpush1.msra.mxu0 0.0
    %50 = vmatprep.subr.mxu0 0.0
    %51 = vmatpush1.msra.mxu0 0.0
    %52 = vmatprep.subr.mxu0 0.0
    %53 = vmatpush1.msra.mxu0 %v20
    %54 = vmatprep.subr.mxu0 0.0
    %55 = vmatpush2.msra.mxu0 0.0
    %56 = vmatprep.subr.mxu0 0.0
    %57 = vmatpush2.msra.mxu0 0.0
    %58 = vmatprep.subr.mxu0 0.0
    %59 = vmatpush2.msra.mxu0 0.0
    %60 = vmatprep.subr.mxu0 0.0
    %61 = vmatpush2.msra.mxu0 0.0
    %62 = vmatprep.subr.mxu0 0.0
    %63 = vmatpush2.msra.mxu0 0.0
    %64 = vmatprep.subr.mxu0 0.0
    %65 = vmatpush2.msra.mxu0 0.0
    %66 = vmatprep.subr.mxu0 0.0
    %67 = vmatpush2.msra.mxu0 0.0
    %68 = vmatprep.subr.mxu0 0.0
    %69 = vmatpush2.msra.mxu0 0.0
    %70 = vmatprep.subr.mxu0 0.0
    %71 = vmatpush2.msra.mxu0 0.0
    %72 = vmatprep.subr.mxu0 0.0
    %73 = vmatpush2.msra.mxu0 0.0
    %74 = vmatprep.subr.mxu0 0.0
    %75 = vmatpush2.msra.mxu0 0.0
    %76 = vmatprep.subr.mxu0 0.0
    %77 = vmatpush2.msra.mxu0 0.0
    %78 = vmatprep.subr.mxu0 0.0
    %79 = vmatpush2.msra.mxu0 0.0
    %80 = vmatprep.subr.mxu0 0.0
    %81 = vmatpush2.msra.mxu0 0.0
    %82 = vmatprep.subr.mxu0 0.0
    %83 = vmatpush2.msra.mxu0 0.0
    %84 = vmatprep.subr.mxu0 0.0
    %85 = vmatpush2.msra.mxu0 0.0
    %86 = vmatprep.mubr.f32.mxu0 0.0
    %87 = vmatmul.mubr.f32.gmra.mxu0 %v16
    %v88 = vpop.f32.mrf.mxu0
    %v89 = vadd.f32 0.0, %v88
    %v90 = vpop.f32.mrf.mxu0
    %91 = vdwg.mxu0
    %vm92 = vcmask 523264
    %93 = vst.msk [vmem:[#allocation2] sm:$0xff] %vm92, %v89
    %s94 = scalar_lea.vmem %s0, 4
    %v95 = vld [vmem:[%s94] sm:$0xf]
    %v97 = vsel %vm18, %v95, 0
    %99 = vmatprep.subr.mxu0 0.0
    %100 = vmatpush1.msra.mxu0 0.0
    %101 = vmatprep.subr.mxu0 0.0
    %102 = vmatpush1.msra.mxu0 0.0
    %103 = vmatprep.subr.mxu0 0.0
    %104 = vmatpush1.msra.mxu0 0.0
    %105 = vmatprep.subr.mxu0 0.0
    %106 = vmatpush1.msra.mxu0 0.0
    %107 = vmatprep.subr.mxu0 0.0
    %108 = vmatpush1.msra.mxu0 0.0
    %109 = vmatprep.subr.mxu0 0.0
    %110 = vmatpush1.msra.mxu0 0.0
    %111 = vmatprep.subr.mxu0 0.0
    %112 = vmatpush1.msra.mxu0 0.0
    %113 = vmatprep.subr.mxu0 0.0
    %114 = vmatpush1.msra.mxu0 0.0
    %115 = vmatprep.subr.mxu0 0.0
    %116 = vmatpush1.msra.mxu0 0.0
    %117 = vmatprep.subr.mxu0 0.0
    %118 = vmatpush1.msra.mxu0 0.0
    %119 = vmatprep.subr.mxu0 0.0
    %120 = vmatpush1.msra.mxu0 0.0
    %121 = vmatprep.subr.mxu0 0.0
    %122 = vmatpush1.msra.mxu0 0.0
    %123 = vmatprep.subr.mxu0 0.0
    %124 = vmatpush1.msra.mxu0 0.0
    %125 = vmatprep.subr.mxu0 0.0
    %126 = vmatpush1.msra.mxu0 0.0
    %127 = vmatprep.subr.mxu0 0.0
    %128 = vmatpush1.msra.mxu0 0.0
    %129 = vmatprep.subr.mxu0 0.0
    %130 = vmatpush1.msra.mxu0 %v97
    %131 = vmatprep.subr.mxu0 0.0
    %132 = vmatpush2.msra.mxu0 0.0
    %133 = vmatprep.subr.mxu0 0.0
    %134 = vmatpush2.msra.mxu0 0.0
    %135 = vmatprep.subr.mxu0 0.0
    %136 = vmatpush2.msra.mxu0 0.0
    %137 = vmatprep.subr.mxu0 0.0
    %138 = vmatpush2.msra.mxu0 0.0
    %139 = vmatprep.subr.mxu0 0.0
    %140 = vmatpush2.msra.mxu0 0.0
    %141 = vmatprep.subr.mxu0 0.0
    %142 = vmatpush2.msra.mxu0 0.0
    %143 = vmatprep.subr.mxu0 0.0
    %144 = vmatpush2.msra.mxu0 0.0
    %145 = vmatprep.subr.mxu0 0.0
    %146 = vmatpush2.msra.mxu0 0.0
    %147 = vmatprep.subr.mxu0 0.0
    %148 = vmatpush2.msra.mxu0 0.0
    %149 = vmatprep.subr.mxu0 0.0
    %150 = vmatpush2.msra.mxu0 0.0
    %151 = vmatprep.subr.mxu0 0.0
    %152 = vmatpush2.msra.mxu0 0.0
    %153 = vmatprep.subr.mxu0 0.0
    %154 = vmatpush2.msra.mxu0 0.0
    %155 = vmatprep.subr.mxu0 0.0
    %156 = vmatpush2.msra.mxu0 0.0
    %157 = vmatprep.subr.mxu0 0.0
    %158 = vmatpush2.msra.mxu0 0.0
    %159 = vmatprep.subr.mxu0 0.0
    %160 = vmatpush2.msra.mxu0 0.0
    %161 = vmatprep.subr.mxu0 0.0
    %162 = vmatpush2.msra.mxu0 0.0
    %163 = vmatprep.mubr.f32.mxu0 0.0
    %164 = vmatmul.mubr.f32.gmra.mxu0 %v16
    %v165 = vpop.f32.mrf.mxu0
    %v166 = vadd.f32 0.0, %v165
    %v167 = vpop.f32.mrf.mxu0
    %168 = vdwg.mxu0
    %s169 = scalar_lea.vmem [#allocation2], 8
    %170 = vst.msk [vmem:[%s169] sm:$0xff] %vm92, %v166
    // Predicated region
    $region10: #{tpu_custom_call.1} parent=1 // pred_check
      _
    $region11: #{tpu_custom_call.1} parent=1 // pred_check_branch
      %172 = sbr.rel (0) target = $region13
    $region12: #{tpu_custom_call.1} parent=1 // pred_region
      %s174 = ssub.s32 256, 256
      %175 = vsyncadd [#allocation3], %s174
      %s176 = sshll.u32 [#allocation2], 4
      %s177 = int_to_ptr.vmem [resolvable:$true] %s176
      %182 = dma.vmem_to_hbm [thread:$0]  %s177, 256, %s2, [#allocation3], 128, 128, 8
    $region13: #{tpu_custom_call.1} parent=1 // pred_fallthru
      _
    // Predicated region
    $region14: #{tpu_custom_call.1} parent=1 // pred_check
      _
    $region15: #{tpu_custom_call.1} parent=1 // pred_check_branch
      %184 = sbr.rel (0) target = $region17
    $region16: #{tpu_custom_call.1} parent=1 // pred_region
      %185 = dma.done [#allocation3], 256
    $region17: #{tpu_custom_call.1} parent=1 // pred_fallthru
      _
    %186 = vsyncpa [#allocation3], 1

</llo_original>
